<compile_context>
chip_gen: v7x
topology: tpu7x:2x2x1
jax: 0.10.0
libtpu: 0.0.40
codegen_flags: <defaults>
</compile_context>

<pallas_src>
import functools

import jax
import jax.numpy as jnp
import numpy as np
from jax import lax
from jax.experimental import pallas as pl
from jax.experimental.pallas import tpu as pltpu

_LANE = 128
_SUBLANE = 8
_VREG = _SUBLANE * _LANE  # 1024 elements


def _wmse_kernel(pred_ref, tgt_ref, w_ref, accm_ref, accp_ref, accnz_ref, *,
                 rows_total, tile_rows, tiles_per_core, tiles_total,
                 mask_tail, has_dummy):
    """Accumulate per-tile partial reductions into resident (8,128) outputs."""
    c = pl.program_id(0)          # core-parallel axis
    i = pl.program_id(1)          # sequential reduction axis
    tile_idx = c * tiles_per_core + i

    @pl.when(i == 0)
    def _init():
        accm_ref[...] = jnp.zeros_like(accm_ref)
        accp_ref[...] = jnp.zeros_like(accp_ref)
        accnz_ref[...] = jnp.zeros_like(accnz_ref)

    n_chunks = tile_rows // _SUBLANE

    def tile_body(apply_mask):
        if apply_mask:
            row_iota = lax.broadcasted_iota(jnp.int32, (_SUBLANE, _LANE), 0)

        def chunk(k, carry):
            sm, sp, snz = carry
            r0 = pl.multiple_of(k * _SUBLANE, _SUBLANE)
            p = pred_ref[pl.ds(r0, _SUBLANE), :].astype(jnp.float32)
            t = tgt_ref[pl.ds(r0, _SUBLANE), :].astype(jnp.float32)
            w = w_ref[pl.ds(r0, _SUBLANE), :].astype(jnp.float32)

            d = p - t
            scale = w * (d * d)                    # weights * (pred - target)^2
            wpos = w > 0.0                         # torch.gt(weights, 0)
            m_scale = jnp.where(wpos, scale, 0.0)
            posf = jnp.where(wpos, 1.0, 0.0)
            nzf = jnp.where(scale != 0.0, 1.0, 0.0)  # torch.nonzero(scale)

            if apply_mask:
                # Row-level validity: excludes the garbage rows of a partial
                # final block (OOB region of the last DMA'd tile).
                row = tile_idx * tile_rows + k * _SUBLANE + row_iota
                valid = row < rows_total
                m_scale = jnp.where(valid, m_scale, 0.0)
                posf = jnp.where(valid, posf, 0.0)
                nzf = jnp.where(valid, nzf, 0.0)

            return sm + m_scale, sp + posf, snz + nzf

        zeros = jnp.zeros((_SUBLANE, _LANE), jnp.float32)
        sm, sp, snz = lax.fori_loop(0, n_chunks, chunk, (zeros, zeros, zeros),
                                    unroll=min(8, n_chunks))
        accm_ref[...] += sm
        accp_ref[...] += sp
        accnz_ref[...] += snz

    if mask_tail:
        # Fast path for tiles known to be fully in-bounds; masked path only
        # for the last real tile (partial block).
        @pl.when(tile_idx < tiles_total - 1)
        def _fast():
            tile_body(apply_mask=False)

        @pl.when(tile_idx == tiles_total - 1)
        def _tail():
            tile_body(apply_mask=True)
    elif has_dummy:
        # Dummy (clamped) trailing tiles on the last core contribute nothing.
        @pl.when(tile_idx < tiles_total)
        def _real():
            tile_body(apply_mask=False)
    else:
        tile_body(apply_mask=False)


@functools.partial(jax.jit, static_argnames=("tile_rows", "num_cores"))
def weighted_mse_loss(pred, target, weights, *, tile_rows=2048, num_cores=2):
    assert pred.shape == target.shape == weights.shape
    assert tile_rows % _SUBLANE == 0
    n = pred.size

    # Flatten (layout no-op). Pad only when numel is not a multiple of one
    # vreg (8*128); typical NCHW activations need no copy at all.
    n_pad = pl.cdiv(n, _VREG) * _VREG

    def _prep(x):
        x = x.reshape(-1)
        if n_pad != n:
            # Zero padding is inert: scale == 0 and weights <= 0 there.
            x = jnp.pad(x, (0, n_pad - n))
        return x.reshape(n_pad // _LANE, _LANE)

    pf, tf, wf = _prep(pred), _prep(target), _prep(weights)
    rows = n_pad // _LANE

    tile_rows_eff = min(tile_rows, rows)           # multiple of 8 (or full dim)
    tiles_total = pl.cdiv(rows, tile_rows_eff)
    ncores = num_cores if tiles_total >= num_cores else 1
    tiles_per_core = pl.cdiv(tiles_total, ncores)
    mask_tail = (rows % tile_rows_eff) != 0        # last block overruns rows?
    has_dummy = ncores * tiles_per_core > tiles_total

    def in_map(c, i):
        # Clamp so trailing dummy tiles on the last core stay in bounds;
        # their contribution is skipped/masked inside the kernel.
        return (jnp.minimum(c * tiles_per_core + i, tiles_total - 1), 0)

    in_spec = pl.BlockSpec((tile_rows_eff, _LANE), in_map)
    acc_spec = pl.BlockSpec((_SUBLANE, _LANE), lambda c, i: (c, 0))
    acc_shape = jax.ShapeDtypeStruct((ncores * _SUBLANE, _LANE), jnp.float32)

    kernel = functools.partial(
        _wmse_kernel,
        rows_total=rows,
        tile_rows=tile_rows_eff,
        tiles_per_core=tiles_per_core,
        tiles_total=tiles_total,
        mask_tail=mask_tail,
        has_dummy=has_dummy,
    )

    accm, accp, accnz = pl.pallas_call(
        kernel,
        out_shape=(acc_shape, acc_shape, acc_shape),
        grid_spec=pltpu.PrefetchScalarGridSpec(
            num_scalar_prefetch=0,
            grid=(ncores, tiles_per_core),
            in_specs=[in_spec, in_spec, in_spec],
            out_specs=[acc_spec, acc_spec, acc_spec],
        ),
        compiler_params=pltpu.CompilerParams(
            dimension_semantics=("parallel", "arbitrary"),
        ),
    )(pf, tf, wf)

    sum_masked = jnp.sum(accm)
    cnt_pos = jnp.sum(accp)
    cnt_nonzero = jnp.sum(accnz)

    # Original branch:
    #   any nonzero scale -> mean over weights > 0 (0/0 -> NaN matches
    #                        torch.mean of an empty masked_select)
    #   all scale == 0    -> torch.mean(scale) == 0.0 exactly
    return jnp.where(cnt_nonzero > 0, sum_masked / cnt_pos, jnp.float32(0.0))


def _reference(pred, target, weights):
    """Pure-JAX reference mirroring the PyTorch forward."""
    pred = pred.astype(jnp.float32)
    target = target.astype(jnp.float32)
    weights = weights.astype(jnp.float32)
    scale = weights * (pred - target) ** 2
    has_nonzero = jnp.count_nonzero(scale) != 0
    pos = weights > 0
    masked_mean = jnp.sum(jnp.where(pos, scale, 0.0)) / jnp.sum(
        pos.astype(jnp.float32))
    return jnp.where(has_nonzero, masked_mean, jnp.mean(scale))


def _check(shape, key, **kw):
    k1, k2, k3 = jax.random.split(key, 3)
    pred = jax.random.normal(k1, shape, dtype=jnp.float32)
    target = jax.random.normal(k2, shape, dtype=jnp.float32)
    u = jax.random.uniform(k3, shape, dtype=jnp.float32)
    weights = jnp.where(u > 0.5, u, 0.0)
    loss = jax.block_until_ready(weighted_mse_loss(pred, target, weights, **kw))
    ref = jax.block_until_ready(_reference(pred, target, weights))
    assert np.isfinite(float(loss)), "loss is not finite"
    assert np.allclose(float(loss), float(ref), rtol=1e-5, atol=1e-6), (
        shape, float(loss), float(ref))
    return pred, weights


if __name__ == "__main__":
    key = jax.random.PRNGKey(0)
    k0, k1, k2 = jax.random.split(key, 3)

    # Main case: NCHW (B, C, H, W) as in the PyTorch caller.
    pred, weights = _check((2, 4, 16, 16), k0)

    # All-zero branch: scale == 0 everywhere -> loss == 0.0 exactly.
    zero_loss = jax.block_until_ready(
        weighted_mse_loss(pred, pred, jnp.zeros_like(weights)))
    assert float(zero_loss) == 0.0

    # Odd numel (exercises tail padding + row masking) with small tiles so the
    # two-core grid split and the clamped dummy tile paths are covered.
    _check((2, 3, 17, 19), k1, tile_rows=8)   # tiles_total = 2
    _check((2, 4, 16, 24), k2, tile_rows=8)   # tiles_total = 3 (odd split)

    print("KERNEL_OK")
</pallas_src>

<mosaic_0001>
module attributes {stable_mosaic.version = 11 : i64} {
  func.func @_wmse_kernel(%arg0: i32, %arg1: i32, %arg2: memref<16x128xf32, #tpu.memory_space<vmem>>, %arg3: memref<16x128xf32, #tpu.memory_space<vmem>>, %arg4: memref<16x128xf32, #tpu.memory_space<vmem>>, %arg5: memref<8x128xf32, #tpu.memory_space<vmem>>, %arg6: memref<8x128xf32, #tpu.memory_space<vmem>>, %arg7: memref<8x128xf32, #tpu.memory_space<vmem>>) attributes {dimension_semantics = [#tpu.dimension_semantics<parallel>, #tpu.dimension_semantics<arbitrary>], iteration_bounds = array<i64: 1, 1>, scalar_prefetch = 0 : i64, scratch_operands = 0 : i64, tpu.core_type = #tpu.core_type<tc>, window_params = [{transform_indices = @transform_0, window_bounds = array<i64: 16, 128>}, {transform_indices = @transform_1, window_bounds = array<i64: 16, 128>}, {transform_indices = @transform_2, window_bounds = array<i64: 16, 128>}, {transform_indices = @transform_3, window_bounds = array<i64: 8, 128>}, {transform_indices = @transform_4, window_bounds = array<i64: 8, 128>}, {transform_indices = @transform_5, window_bounds = array<i64: 8, 128>}]} {
    %c0_i32 = arith.constant 0 : i32
    %0 = arith.cmpi eq, %arg1, %c0_i32 : i32
    %1 = arith.extui %0 : i1 to i32
    %c0_i32_0 = arith.constant 0 : i32
    %2 = arith.cmpi ne, %1, %c0_i32_0 : i32
    scf.if %2 {
      %cst_34 = arith.constant 0.000000e+00 : f32
      %65 = vector.broadcast %cst_34 : f32 to vector<8x128xf32>
      %c0_35 = arith.constant 0 : index
      %c0_36 = arith.constant 0 : index
      %66 = vector.load %arg5[%c0_35, %c0_36] : memref<8x128xf32, #tpu.memory_space<vmem>>, vector<8x128xf32>
      tpu.vector_store %arg5[%c0_35, %c0_36], %65 {strides = array<i32>} : memref<8x128xf32, #tpu.memory_space<vmem>>, vector<8x128xf32>,
      %cst_37 = arith.constant 0.000000e+00 : f32
      %67 = vector.broadcast %cst_37 : f32 to vector<8x128xf32>
      %c0_38 = arith.constant 0 : index
      %c0_39 = arith.constant 0 : index
      %68 = vector.load %arg6[%c0_38, %c0_39] : memref<8x128xf32, #tpu.memory_space<vmem>>, vector<8x128xf32>
      tpu.vector_store %arg6[%c0_38, %c0_39], %67 {strides = array<i32>} : memref<8x128xf32, #tpu.memory_space<vmem>>, vector<8x128xf32>,
      %cst_40 = arith.constant 0.000000e+00 : f32
      %69 = vector.broadcast %cst_40 : f32 to vector<8x128xf32>
      %c0_41 = arith.constant 0 : index
      %c0_42 = arith.constant 0 : index
      %70 = vector.load %arg7[%c0_41, %c0_42] : memref<8x128xf32, #tpu.memory_space<vmem>>, vector<8x128xf32>
      tpu.vector_store %arg7[%c0_41, %c0_42], %69 {strides = array<i32>} : memref<8x128xf32, #tpu.memory_space<vmem>>, vector<8x128xf32>,
    } else {
    }
    %cst = arith.constant 0.000000e+00 : f32
    %3 = vector.broadcast %cst : f32 to vector<8x128xf32>
    %c0_i32_1 = arith.constant 0 : i32
    %c8_i32 = arith.constant 8 : i32
    %4 = arith.muli %c0_i32_1, %c8_i32 : i32
    %5 = tpu.assume_multiple %4, 8 : i32
    %6 = arith.index_cast %5 : i32 to index
    %c0 = arith.constant 0 : index
    %7 = vector.load %arg2[%6, %c0] : memref<16x128xf32, #tpu.memory_space<vmem>>, vector<8x128xf32>
    %8 = arith.index_cast %5 : i32 to index
    %c0_2 = arith.constant 0 : index
    %9 = vector.load %arg3[%8, %c0_2] : memref<16x128xf32, #tpu.memory_space<vmem>>, vector<8x128xf32>
    %10 = arith.index_cast %5 : i32 to index
    %c0_3 = arith.constant 0 : index
    %11 = vector.load %arg4[%10, %c0_3] : memref<16x128xf32, #tpu.memory_space<vmem>>, vector<8x128xf32>
    %12 = arith.subf %7, %9 : vector<8x128xf32>
    %13 = arith.mulf %12, %12 : vector<8x128xf32>
    %14 = arith.mulf %11, %13 : vector<8x128xf32>
    %cst_4 = arith.constant 0.000000e+00 : f32
    %15 = vector.broadcast %cst_4 : f32 to vector<8x128xf32>
    %16 = arith.cmpf ogt, %11, %15 : vector<8x128xf32>
    %cst_5 = arith.constant 0.000000e+00 : f32
    %17 = vector.broadcast %cst_5 : f32 to vector<8x128xf32>
    %18 = arith.select %16, %14, %17 : vector<8x128xi1>, vector<8x128xf32>
    %cst_6 = arith.constant 1.000000e+00 : f32
    %cst_7 = arith.constant 0.000000e+00 : f32
    %19 = vector.broadcast %cst_6 : f32 to vector<8x128xf32>
    %20 = vector.broadcast %cst_7 : f32 to vector<8x128xf32>
    %21 = arith.select %16, %19, %20 : vector<8x128xi1>, vector<8x128xf32>
    %cst_8 = arith.constant 0.000000e+00 : f32
    %22 = vector.broadcast %cst_8 : f32 to vector<8x128xf32>
    %23 = arith.cmpf one, %14, %22 : vector<8x128xf32>
    %cst_9 = arith.constant 1.000000e+00 : f32
    %cst_10 = arith.constant 0.000000e+00 : f32
    %24 = vector.broadcast %cst_9 : f32 to vector<8x128xf32>
    %25 = vector.broadcast %cst_10 : f32 to vector<8x128xf32>
    %26 = arith.select %23, %24, %25 : vector<8x128xi1>, vector<8x128xf32>
    %27 = arith.addf %3, %18 : vector<8x128xf32>
    %28 = arith.addf %3, %21 : vector<8x128xf32>
    %29 = arith.addf %3, %26 : vector<8x128xf32>
    %c1_i32 = arith.constant 1 : i32
    %c8_i32_11 = arith.constant 8 : i32
    %30 = arith.muli %c1_i32, %c8_i32_11 : i32
    %31 = tpu.assume_multiple %30, 8 : i32
    %32 = arith.index_cast %31 : i32 to index
    %c0_12 = arith.constant 0 : index
    %33 = vector.load %arg2[%32, %c0_12] : memref<16x128xf32, #tpu.memory_space<vmem>>, vector<8x128xf32>
    %34 = arith.index_cast %31 : i32 to index
    %c0_13 = arith.constant 0 : index
    %35 = vector.load %arg3[%34, %c0_13] : memref<16x128xf32, #tpu.memory_space<vmem>>, vector<8x128xf32>
    %36 = arith.index_cast %31 : i32 to index
    %c0_14 = arith.constant 0 : index
    %37 = vector.load %arg4[%36, %c0_14] : memref<16x128xf32, #tpu.memory_space<vmem>>, vector<8x128xf32>
    %38 = arith.subf %33, %35 : vector<8x128xf32>
    %39 = arith.mulf %38, %38 : vector<8x128xf32>
    %40 = arith.mulf %37, %39 : vector<8x128xf32>
    %cst_15 = arith.constant 0.000000e+00 : f32
    %41 = vector.broadcast %cst_15 : f32 to vector<8x128xf32>
    %42 = arith.cmpf ogt, %37, %41 : vector<8x128xf32>
    %cst_16 = arith.constant 0.000000e+00 : f32
    %43 = vector.broadcast %cst_16 : f32 to vector<8x128xf32>
    %44 = arith.select %42, %40, %43 : vector<8x128xi1>, vector<8x128xf32>
    %cst_17 = arith.constant 1.000000e+00 : f32
    %cst_18 = arith.constant 0.000000e+00 : f32
    %45 = vector.broadcast %cst_17 : f32 to vector<8x128xf32>
    %46 = vector.broadcast %cst_18 : f32 to vector<8x128xf32>
    %47 = arith.select %42, %45, %46 : vector<8x128xi1>, vector<8x128xf32>
    %cst_19 = arith.constant 0.000000e+00 : f32
    %48 = vector.broadcast %cst_19 : f32 to vector<8x128xf32>
    %49 = arith.cmpf one, %40, %48 : vector<8x128xf32>
    %cst_20 = arith.constant 1.000000e+00 : f32
    %cst_21 = arith.constant 0.000000e+00 : f32
    %50 = vector.broadcast %cst_20 : f32 to vector<8x128xf32>
    %51 = vector.broadcast %cst_21 : f32 to vector<8x128xf32>
    %52 = arith.select %49, %50, %51 : vector<8x128xi1>, vector<8x128xf32>
    %53 = arith.addf %27, %44 : vector<8x128xf32>
    %54 = arith.addf %28, %47 : vector<8x128xf32>
    %55 = arith.addf %29, %52 : vector<8x128xf32>
    %c2_i32 = arith.constant 2 : i32
    %c0_22 = arith.constant 0 : index
    %c0_23 = arith.constant 0 : index
    %56 = vector.load %arg5[%c0_22, %c0_23] : memref<8x128xf32, #tpu.memory_space<vmem>>, vector<8x128xf32>
    %57 = arith.addf %56, %53 : vector<8x128xf32>
    %c0_24 = arith.constant 0 : index
    %c0_25 = arith.constant 0 : index
    %58 = vector.load %arg5[%c0_24, %c0_25] : memref<8x128xf32, #tpu.memory_space<vmem>>, vector<8x128xf32>
    tpu.vector_store %arg5[%c0_24, %c0_25], %57 {strides = array<i32>} : memref<8x128xf32, #tpu.memory_space<vmem>>, vector<8x128xf32>,
    %c0_26 = arith.constant 0 : index
    %c0_27 = arith.constant 0 : index
    %59 = vector.load %arg6[%c0_26, %c0_27] : memref<8x128xf32, #tpu.memory_space<vmem>>, vector<8x128xf32>
    %60 = arith.addf %59, %54 : vector<8x128xf32>
    %c0_28 = arith.constant 0 : index
    %c0_29 = arith.constant 0 : index
    %61 = vector.load %arg6[%c0_28, %c0_29] : memref<8x128xf32, #tpu.memory_space<vmem>>, vector<8x128xf32>
    tpu.vector_store %arg6[%c0_28, %c0_29], %60 {strides = array<i32>} : memref<8x128xf32, #tpu.memory_space<vmem>>, vector<8x128xf32>,
    %c0_30 = arith.constant 0 : index
    %c0_31 = arith.constant 0 : index
    %62 = vector.load %arg7[%c0_30, %c0_31] : memref<8x128xf32, #tpu.memory_space<vmem>>, vector<8x128xf32>
    %63 = arith.addf %62, %55 : vector<8x128xf32>
    %c0_32 = arith.constant 0 : index
    %c0_33 = arith.constant 0 : index
    %64 = vector.load %arg7[%c0_32, %c0_33] : memref<8x128xf32, #tpu.memory_space<vmem>>, vector<8x128xf32>
    tpu.vector_store %arg7[%c0_32, %c0_33], %63 {strides = array<i32>} : memref<8x128xf32, #tpu.memory_space<vmem>>, vector<8x128xf32>,
    return
  }
  func.func @transform_0(%arg0: i32, %arg1: i32) -> (i32, i32) {
    %c1_i32 = arith.constant 1 : i32
    %0 = arith.muli %arg0, %c1_i32 : i32
    %1 = arith.addi %0, %arg1 : i32
    %c0_i32 = arith.constant 0 : i32
    %2 = arith.minsi %1, %c0_i32 : i32
    %c0_i32_0 = arith.constant 0 : i32
    %c0_i32_1 = arith.constant 0 : i32
    return %2, %c0_i32_0 : i32, i32
  }
  func.func @transform_1(%arg0: i32, %arg1: i32) -> (i32, i32) {
    %c1_i32 = arith.constant 1 : i32
    %0 = arith.muli %arg0, %c1_i32 : i32
    %1 = arith.addi %0, %arg1 : i32
    %c0_i32 = arith.constant 0 : i32
    %2 = arith.minsi %1, %c0_i32 : i32
    %c0_i32_0 = arith.constant 0 : i32
    %c0_i32_1 = arith.constant 0 : i32
    return %2, %c0_i32_0 : i32, i32
  }
  func.func @transform_2(%arg0: i32, %arg1: i32) -> (i32, i32) {
    %c1_i32 = arith.constant 1 : i32
    %0 = arith.muli %arg0, %c1_i32 : i32
    %1 = arith.addi %0, %arg1 : i32
    %c0_i32 = arith.constant 0 : i32
    %2 = arith.minsi %1, %c0_i32 : i32
    %c0_i32_0 = arith.constant 0 : i32
    %c0_i32_1 = arith.constant 0 : i32
    return %2, %c0_i32_0 : i32, i32
  }
  func.func @transform_3(%arg0: i32, %arg1: i32) -> (i32, i32) {
    %c0_i32 = arith.constant 0 : i32
    %c0_i32_0 = arith.constant 0 : i32
    return %arg0, %c0_i32 : i32, i32
  }
  func.func @transform_4(%arg0: i32, %arg1: i32) -> (i32, i32) {
    %c0_i32 = arith.constant 0 : i32
    %c0_i32_0 = arith.constant 0 : i32
    return %arg0, %c0_i32 : i32, i32
  }
  func.func @transform_5(%arg0: i32, %arg1: i32) -> (i32, i32) {
    %c0_i32 = arith.constant 0 : i32
    %c0_i32_0 = arith.constant 0 : i32
    return %arg0, %c0_i32 : i32, i32
  }
}

</mosaic_0001>

<llo_original>
// kernel: weighted_mse_loss.1
$region0: #{weighted_mse_loss.1}
  #allocation0 [shape = 'u32[]', space=smem, size = 0x4, offset = 0x4, fixed_abs, tag = 'smem constant byte address 0x4 - core index']
  #allocation1 [shape = 'u32[144,128]{1,0:T(1,128)}', space=vmem, size = 0x12000, scoped, tag = 'internal scratch']
  %s0 = inlined_call_operand.vmem [shape: f32[16,128], index: 0, kind: input, shape index: {}]
  %s1 = inlined_call_operand.vmem [shape: f32[16,128], index: 1, kind: input, shape index: {}]
  %s2 = inlined_call_operand.vmem [shape: f32[16,128], index: 2, kind: input, shape index: {}]
  %s3 = inlined_call_operand.vmem [shape: f32[8,128], index: 3, kind: output, shape index: {0}]
  %s4 = inlined_call_operand.vmem [shape: f32[8,128], index: 4, kind: output, shape index: {1}]
  %s5 = inlined_call_operand.vmem [shape: f32[8,128], index: 5, kind: output, shape index: {2}]
  %6 = xla_tuple %s3, %s4, %s5
  %s7 = sld [smem:[#allocation0]]
  $region42: #{weighted_mse_loss.1} parent=0
    _
  %s9 = ssub.s32 1, %s7
  %s10 = scalar_select 0, %s9, %s7
  // Predicated region
  $region2: #{weighted_mse_loss.1} parent=0 // pred_check
    _
  $region3: #{weighted_mse_loss.1} parent=0 // pred_check_branch
    %12 = sbr.rel (0) target = $region5
  $region4: #{weighted_mse_loss.1} parent=0 // pred_region
    %s13 = sadd.s32 0, 0
    %p14 = scmp.lt.s32.totalorder %s13, 0
    %s15 = scalar_select %p14, %s13, 0
    %s16 = smul.u32 2, %s15
    %p17 = scmp.lt.s32.totalorder %s16, 1
    %s18 = scalar_select %p17, %s16, 1
    %s19 = smul.addr %s18, 8
    %s20 = scalar_lea.vmem %s0, %s19
    %s21 = sadd.s32 0, 0
    %p22 = scmp.lt.s32.totalorder %s21, 0
    %s23 = scalar_select %p22, %s21, 0
    %s24 = smul.u32 2, %s23
  $region5: #{weighted_mse_loss.1} parent=0 // pred_fallthru
    _
  // Predicated region
  $region6: #{weighted_mse_loss.1} parent=0 // pred_check
    _
  $region7: #{weighted_mse_loss.1} parent=0 // pred_check_branch
    %26 = sbr.rel (0) target = $region9
  $region8: #{weighted_mse_loss.1} parent=0 // pred_region
    %s27 = sadd.s32 0, 0
    %p28 = scmp.lt.s32.totalorder %s27, 0
    %s29 = scalar_select %p28, %s27, 0
    %s30 = smul.u32 2, %s29
    %p31 = scmp.lt.s32.totalorder %s30, 1
    %s32 = scalar_select %p31, %s30, 1
    %s33 = smul.addr %s32, 8
    %s34 = scalar_lea.vmem %s1, %s33
    %s35 = sadd.s32 0, 0
    %p36 = scmp.lt.s32.totalorder %s35, 0
    %s37 = scalar_select %p36, %s35, 0
    %s38 = smul.u32 2, %s37
  $region9: #{weighted_mse_loss.1} parent=0 // pred_fallthru
    _
  // Predicated region
  $region10: #{weighted_mse_loss.1} parent=0 // pred_check
    _
  $region11: #{weighted_mse_loss.1} parent=0 // pred_check_branch
    %40 = sbr.rel (0) target = $region13
  $region12: #{weighted_mse_loss.1} parent=0 // pred_region
    %s41 = sadd.s32 0, 0
    %p42 = scmp.lt.s32.totalorder %s41, 0
    %s43 = scalar_select %p42, %s41, 0
    %s44 = smul.u32 2, %s43
    %p45 = scmp.lt.s32.totalorder %s44, 1
    %s46 = scalar_select %p45, %s44, 1
    %s47 = smul.addr %s46, 8
    %s48 = scalar_lea.vmem %s2, %s47
    %s49 = sadd.s32 0, 0
    %p50 = scmp.lt.s32.totalorder %s49, 0
    %s51 = scalar_select %p50, %s49, 0
    %s52 = smul.u32 2, %s51
  $region13: #{weighted_mse_loss.1} parent=0 // pred_fallthru
    _
  %s53 = sadd.s32 0, 0
  %p54 = scmp.lt.s32.totalorder %s53, 0
  %s55 = scalar_select %p54, %s53, 0
  %s56 = smul.u32 2, %s55
  %p57 = scmp.lt.s32.totalorder %s56, 1
  %s58 = scalar_select %p57, %s56, 1
  %s59 = smul.addr %s58, 8
  %s60 = scalar_lea.vmem %s0, %s59
  %s61 = sadd.s32 0, 0
  %p62 = scmp.lt.s32.totalorder %s61, 0
  %s63 = scalar_select %p62, %s61, 0
  %s64 = smul.u32 2, %s63
  %p65 = scmp.lt.s32.totalorder %s64, 1
  %s66 = scalar_select %p65, %s64, 1
  %s67 = smul.addr %s66, 8
  %s68 = scalar_lea.vmem %s1, %s67
  %s69 = sadd.s32 0, 0
  %p70 = scmp.lt.s32.totalorder %s69, 0
  %s71 = scalar_select %p70, %s69, 0
  %s72 = smul.u32 2, %s71
  %p73 = scmp.lt.s32.totalorder %s72, 1
  %s74 = scalar_select %p73, %s72, 1
  %s75 = smul.addr %s74, 8
  %s76 = scalar_lea.vmem %s2, %s75
  %s77 = sadd.s32 0, 0
  %p78 = scmp.lt.s32.totalorder %s77, 0
  %s79 = scalar_select %p78, %s77, 0
  %s80 = smul.u32 2, %s79
  %p81 = scmp.lt.s32.totalorder %s80, 1
  %s82 = scalar_select %p81, %s80, 1
  %s83 = smul.addr %s82, 8
  %s84 = scalar_lea.vmem %s0, %s83
  %s85 = sadd.s32 0, 0
  %p86 = scmp.lt.s32.totalorder %s85, 0
  %s87 = scalar_select %p86, %s85, 0
  %s88 = smul.u32 2, %s87
  %s89 = sadd.s32 0, 0
  %p90 = scmp.lt.s32.totalorder %s89, 0
  %s91 = scalar_select %p90, %s89, 0
  %s92 = smul.u32 2, %s91
  %p93 = scmp.lt.s32.totalorder %s92, 1
  %s94 = scalar_select %p93, %s92, 1
  %s95 = smul.addr %s94, 8
  %s96 = scalar_lea.vmem %s1, %s95
  %s97 = sadd.s32 0, 0
  %p98 = scmp.lt.s32.totalorder %s97, 0
  %s99 = scalar_select %p98, %s97, 0
  %s100 = smul.u32 2, %s99
  %s101 = sadd.s32 0, 0
  %p102 = scmp.lt.s32.totalorder %s101, 0
  %s103 = scalar_select %p102, %s101, 0
  %s104 = smul.u32 2, %s103
  %p105 = scmp.lt.s32.totalorder %s104, 1
  %s106 = scalar_select %p105, %s104, 1
  %s107 = smul.addr %s106, 8
  %s108 = scalar_lea.vmem %s2, %s107
  %s109 = sadd.s32 0, 0
  %p110 = scmp.lt.s32.totalorder %s109, 0
  %s111 = scalar_select %p110, %s109, 0
  %s112 = smul.u32 2, %s111
  %p113 = scmp.eq.s32.totalorder 0, 0
  // Predicated region
  $region14: #{weighted_mse_loss.1} parent=0 // pred_check
    %p114 = pneg %p113
  $region15: #{weighted_mse_loss.1} parent=0 // pred_check_branch
    %116 = sbr.rel (%p114) target = $region17
  $region16: #{weighted_mse_loss.1} parent=0 // pred_region
    %117 = vst [vmem:[%s3] sm:$0xff] 0.0
    %118 = vst [vmem:[%s4] sm:$0xff] 0.0
    %119 = vst [vmem:[%s5] sm:$0xff] 0.0
  $region17: #{weighted_mse_loss.1} parent=0 // pred_fallthru
    _
  %v120 = vld [vmem:[%s84] sm:$0xff]
  %v121 = vld [vmem:[%s96] sm:$0xff]
  %v122 = vld [vmem:[%s108] sm:$0xff]
  %v123 = vsub.f32 %v120, %v121
  %v124 = vmul.f32 %v123, %v123
  %v125 = vmul.f32 %v122, %v124
  %vm126 = vcmp.gt.f32.partialorder %v122, 0.0
  %v127 = vsel %vm126, %v125, 0.0
  %v128 = vsel %vm126, 1.0, 0.0
  %vm129 = vcmp.ne.f32.partialorder %v125, 0.0
  %v130 = vsel %vm129, 1.0, 0.0
  %v131 = vadd.f32 %v127, 0.0
  %v132 = vadd.f32 %v128, 0.0
  %v133 = vadd.f32 %v130, 0.0
  %s134 = scalar_lea.vmem %s84, 8
  %v135 = vld [vmem:[%s134] sm:$0xff]
  %s136 = scalar_lea.vmem %s96, 8
  %v137 = vld [vmem:[%s136] sm:$0xff]
  %s138 = scalar_lea.vmem %s108, 8
  %v139 = vld [vmem:[%s138] sm:$0xff]
  %v140 = vsub.f32 %v135, %v137
  %v141 = vmul.f32 %v140, %v140
  %v142 = vmul.f32 %v139, %v141
  %vm143 = vcmp.gt.f32.partialorder %v139, 0.0
  %v144 = vsel %vm143, %v142, 0.0
  %v145 = vsel %vm143, 1.0, 0.0
  %vm146 = vcmp.ne.f32.partialorder %v142, 0.0
  %v147 = vsel %vm146, 1.0, 0.0
  %v148 = vadd.f32 %v131, %v144
  %v149 = vadd.f32 %v132, %v145
  %v150 = vadd.f32 %v133, %v147
  %v151 = vld [vmem:[%s3] sm:$0xff]
  %v152 = vadd.f32 %v151, %v148
  %153 = vst [vmem:[%s3] sm:$0xff] %v152
  %v154 = vld [vmem:[%s4] sm:$0xff]
  %v155 = vadd.f32 %v154, %v149
  %156 = vst [vmem:[%s4] sm:$0xff] %v155
  %v157 = vld [vmem:[%s5] sm:$0xff]
  %v158 = vadd.f32 %v157, %v150
  %159 = vst [vmem:[%s5] sm:$0xff] %v158
  // Predicated region
  $region18: #{weighted_mse_loss.1} parent=0 // pred_check
    _
  $region19: #{weighted_mse_loss.1} parent=0 // pred_check_branch
    %161 = sbr.rel (0) target = $region21
  $region20: #{weighted_mse_loss.1} parent=0 // pred_region
    _
  $region21: #{weighted_mse_loss.1} parent=0 // pred_fallthru
    _
  // Predicated region
  $region22: #{weighted_mse_loss.1} parent=0 // pred_check
    _
  $region23: #{weighted_mse_loss.1} parent=0 // pred_check_branch
    %163 = sbr.rel (0) target = $region25
  $region24: #{weighted_mse_loss.1} parent=0 // pred_region
    _
  $region25: #{weighted_mse_loss.1} parent=0 // pred_fallthru
    _
  // Predicated region
  $region26: #{weighted_mse_loss.1} parent=0 // pred_check
    _
  $region27: #{weighted_mse_loss.1} parent=0 // pred_check_branch
    %165 = sbr.rel (0) target = $region29
  $region28: #{weighted_mse_loss.1} parent=0 // pred_region
    _
  $region29: #{weighted_mse_loss.1} parent=0 // pred_fallthru
    _
  // Predicated region
  $region30: #{weighted_mse_loss.1} parent=0 // pred_check
    _
  $region31: #{weighted_mse_loss.1} parent=0 // pred_check_branch
    %167 = sbr.rel (0) target = $region33
  $region32: #{weighted_mse_loss.1} parent=0 // pred_region
    _
  $region33: #{weighted_mse_loss.1} parent=0 // pred_fallthru
    _
  // Predicated region
  $region34: #{weighted_mse_loss.1} parent=0 // pred_check
    _
  $region35: #{weighted_mse_loss.1} parent=0 // pred_check_branch
    %169 = sbr.rel (0) target = $region37
  $region36: #{weighted_mse_loss.1} parent=0 // pred_region
    _
  $region37: #{weighted_mse_loss.1} parent=0 // pred_fallthru
    _
  // Predicated region
  $region38: #{weighted_mse_loss.1} parent=0 // pred_check
    _
  $region39: #{weighted_mse_loss.1} parent=0 // pred_check_branch
    %171 = sbr.rel (0) target = $region41
  $region40: #{weighted_mse_loss.1} parent=0 // pred_region
    _
  $region41: #{weighted_mse_loss.1} parent=0 // pred_fallthru
    _

</llo_original>
